<compile_context>
chip_gen: v6e
topology: v6e:2x2x1
jax: 0.10.0
libtpu: 0.0.40
codegen_flags: <defaults>
</compile_context>

<pallas_src>
import jax
import jax.numpy as jnp
from jax.experimental import pallas as pl
from jax.experimental.pallas import tpu as pltpu


# ----------------------------------------------------------------------------
# Kernels
# ----------------------------------------------------------------------------
def _pos_emb_kernel_fused(pos_ref, inv_ref, out_ref):
    # pos_ref: (TILE_S, 1) f32, inv_ref: (1, half) f32, out_ref: (TILE_S, demb)
    # Only used when half % 128 == 0, so both stores are lane-aligned and
    # unmasked.
    half = inv_ref.shape[1]
    sinusoid = pos_ref[...] * inv_ref[...]            # outer product via broadcast
    out_ref[:, :half] = jnp.sin(sinusoid).astype(out_ref.dtype)
    out_ref[:, half:] = jnp.cos(sinusoid).astype(out_ref.dtype)


def _pos_emb_kernel_split(pos_ref, inv_ref, sin_ref, cos_ref):
    # pos_ref: (TILE_S, 1) f32, inv_ref: (1, half) f32
    # sin_ref/cos_ref: (TILE_S, half) -- full-width (lane-dense) stores; the
    # concat happens in the JAX wrapper.
    sinusoid = pos_ref[...] * inv_ref[...]
    sin_ref[...] = jnp.sin(sinusoid).astype(sin_ref.dtype)
    cos_ref[...] = jnp.cos(sinusoid).astype(cos_ref.dtype)


# ----------------------------------------------------------------------------
# Wrapper
# ----------------------------------------------------------------------------
def _choose_tile_s(S, row_bytes):
    """Pick the sequence tile: ~2 MiB per output buffer.

    With double buffering this leaves ample headroom on v7x (64 MiB physical
    VMEM, 32 MiB default scoped limit) and still gives >=512 rows for
    demb <= 1024 f32, which measured kernels show is enough to hit ~85%+ of
    HBM roofline.  v6e/v5e (128 MiB VMEM) could use bigger tiles, but the gain
    past this point is marginal for a pure-streaming kernel.
    """
    budget = 2 * 1024 * 1024
    tile = budget // max(row_bytes, 1)
    tile = max(8, min(tile, 4096))
    tile = (tile // 8) * 8          # keep sublane (8) alignment for ragged grids
    if S <= tile:
        return S                    # single block == full array dims (always legal)
    return tile


def _pos_emb_pallas(pos_seq, inv_freq, out_dtype):
    S = pos_seq.shape[0]
    half = inv_freq.shape[0]
    demb = 2 * half
    itemsize = jnp.dtype(out_dtype).itemsize

    pos2d = pos_seq.astype(jnp.float32).reshape(S, 1)
    inv2d = inv_freq.astype(jnp.float32).reshape(1, half)

    tile_s = _choose_tile_s(S, demb * itemsize)
    grid = (pl.cdiv(S, tile_s),)

    pos_spec = pl.BlockSpec((tile_s, 1), lambda i: (i, 0))
    inv_spec = pl.BlockSpec((1, half), lambda i: (0, 0))   # resident across the grid
    cparams = pltpu.CompilerParams(dimension_semantics=("parallel",))

    if half % 128 == 0:
        # Lane-aligned split stores into a single [S, demb] output.
        return pl.pallas_call(
            _pos_emb_kernel_fused,
            grid=grid,
            in_specs=[pos_spec, inv_spec],
            out_specs=pl.BlockSpec((tile_s, demb), lambda i: (i, 0)),
            out_shape=jax.ShapeDtypeStruct((S, demb), out_dtype),
            compiler_params=cparams,
        )(pos2d, inv2d)

    # half not a multiple of 128: emit sin/cos as two full-width outputs and
    # concatenate in the wrapper (keeps every kernel store unmasked).
    sin_out, cos_out = pl.pallas_call(
        _pos_emb_kernel_split,
        grid=grid,
        in_specs=[pos_spec, inv_spec],
        out_specs=(
            pl.BlockSpec((tile_s, half), lambda i: (i, 0)),
            pl.BlockSpec((tile_s, half), lambda i: (i, 0)),
        ),
        out_shape=(
            jax.ShapeDtypeStruct((S, half), out_dtype),
            jax.ShapeDtypeStruct((S, half), out_dtype),
        ),
        compiler_params=cparams,
    )(pos2d, inv2d)
    return jnp.concatenate([sin_out, cos_out], axis=-1)


def positional_embedding(pos_seq, inv_freq, bsz=None, *,
                         out_dtype=jnp.float32, force_pallas=False):
    """pos_seq: [S] float, inv_freq: [demb//2] float.

    Returns [S, 1, demb] (or [S, bsz, demb] if bsz is given, matching the
    PyTorch module's `.expand`).  The bsz broadcast is done outside the kernel
    (fused/free under jit); prefer consuming the [S, 1, demb] form so HBM
    writeback is never multiplied by bsz.
    """
    S = pos_seq.shape[0]
    half = inv_freq.shape[0]
    demb = 2 * half

    tiny = S * demb * jnp.dtype(out_dtype).itemsize < (256 * 1024)
    if tiny and not force_pallas:
        # Pallas custom-call overhead dominates microscopic shapes; let XLA fuse.
        sinusoid = jnp.outer(pos_seq.astype(jnp.float32),
                             inv_freq.astype(jnp.float32))
        pos_emb = jnp.concatenate(
            [jnp.sin(sinusoid), jnp.cos(sinusoid)], axis=-1).astype(out_dtype)
    else:
        pos_emb = _pos_emb_pallas(pos_seq, inv_freq, out_dtype)

    pos_emb = pos_emb[:, None, :]                         # [S, 1, demb]
    if bsz is not None:
        pos_emb = jnp.broadcast_to(pos_emb, (S, bsz, demb))
    return pos_emb


def make_inv_freq(demb):
    # Matches the module's __init__:
    #   inv_freq = 1 / 10000 ** (arange(0, demb, 2) / demb)
    return 1.0 / (10000.0 ** (jnp.arange(0.0, demb, 2.0) / demb))


# ----------------------------------------------------------------------------
# Demo / correctness check
# ----------------------------------------------------------------------------
if __name__ == "__main__":
    key = jax.random.PRNGKey(0)
    k1, k2 = jax.random.split(key)

    # --- Check 1: small module-consistent shapes, half % 128 != 0 path -------
    demb, seq, bsz = 32, 8, 2
    pos_seq = jax.random.uniform(k1, (seq,), dtype=jnp.float32) * 10.0
    inv_freq = make_inv_freq(demb)

    out = positional_embedding(pos_seq, inv_freq, bsz=bsz, force_pallas=True)
    out = jax.block_until_ready(out)

    sinusoid_ref = pos_seq[:, None] * inv_freq[None, :]
    ref = jnp.concatenate([jnp.sin(sinusoid_ref), jnp.cos(sinusoid_ref)], axis=-1)
    ref = jnp.broadcast_to(ref[:, None, :], (seq, bsz, demb))
    assert out.shape == (seq, bsz, demb), out.shape
    assert jnp.allclose(out, ref, atol=1e-5, rtol=1e-5)

    # --- Check 2: lane-aligned path + multi-step ragged grid -----------------
    demb2, seq2 = 256, 2056                      # half=128 -> aligned split-store
    pos2 = jax.random.uniform(k2, (seq2,), dtype=jnp.float32) * 10.0
    inv2 = make_inv_freq(demb2)

    out2 = positional_embedding(pos2, inv2)      # no bsz -> [S, 1, demb]
    out2 = jax.block_until_ready(out2)

    sin2 = pos2[:, None] * inv2[None, :]
    ref2 = jnp.concatenate([jnp.sin(sin2), jnp.cos(sin2)], axis=-1)[:, None, :]
    assert out2.shape == (seq2, 1, demb2), out2.shape
    assert jnp.allclose(out2, ref2, atol=1e-5, rtol=1e-5)

    print("KERNEL_OK")
</pallas_src>

<mosaic_0001>
module attributes {stable_mosaic.version = 11 : i64} {
  func.func @_pos_emb_kernel_split(%arg0: i32, %arg1: memref<8x1xf32, #tpu.memory_space<vmem>>, %arg2: memref<1x16xf32, #tpu.memory_space<vmem>>, %arg3: memref<8x16xf32, #tpu.memory_space<vmem>>, %arg4: memref<8x16xf32, #tpu.memory_space<vmem>>) attributes {dimension_semantics = [#tpu.dimension_semantics<parallel>], iteration_bounds = array<i64: 1>, scalar_prefetch = 0 : i64, scratch_operands = 0 : i64, tpu.core_type = #tpu.core_type<tc>, window_params = [{transform_indices = @transform_0, window_bounds = array<i64: 8, 1>}, {pipeline_mode = #tpu.pipeline_mode<synchronous>, transform_indices = @transform_1, window_bounds = array<i64: 1, 16>}, {transform_indices = @transform_2, window_bounds = array<i64: 8, 16>}, {transform_indices = @transform_3, window_bounds = array<i64: 8, 16>}]} {
    %c0 = arith.constant 0 : index
    %c0_0 = arith.constant 0 : index
    %0 = vector.load %arg1[%c0, %c0_0] : memref<8x1xf32, #tpu.memory_space<vmem>>, vector<8x1xf32>
    %c0_1 = arith.constant 0 : index
    %c0_2 = arith.constant 0 : index
    %1 = vector.load %arg2[%c0_1, %c0_2] : memref<1x16xf32, #tpu.memory_space<vmem>>, vector<1x16xf32>
    %2 = vector.broadcast %0 : vector<8x1xf32> to vector<8x16xf32>
    %3 = vector.broadcast %1 : vector<1x16xf32> to vector<8x16xf32>
    %4 = arith.mulf %2, %3 : vector<8x16xf32>
    %5 = math.sin %4 : vector<8x16xf32>
    %c0_3 = arith.constant 0 : index
    %c0_4 = arith.constant 0 : index
    %6 = vector.load %arg3[%c0_3, %c0_4] : memref<8x16xf32, #tpu.memory_space<vmem>>, vector<8x16xf32>
    tpu.vector_store %arg3[%c0_3, %c0_4], %5 {strides = array<i32>} : memref<8x16xf32, #tpu.memory_space<vmem>>, vector<8x16xf32>,
    %7 = math.cos %4 : vector<8x16xf32>
    %c0_5 = arith.constant 0 : index
    %c0_6 = arith.constant 0 : index
    %8 = vector.load %arg4[%c0_5, %c0_6] : memref<8x16xf32, #tpu.memory_space<vmem>>, vector<8x16xf32>
    tpu.vector_store %arg4[%c0_5, %c0_6], %7 {strides = array<i32>} : memref<8x16xf32, #tpu.memory_space<vmem>>, vector<8x16xf32>,
    return
  }
  func.func @transform_0(%arg0: i32) -> (i32, i32) {
    %c0_i32 = arith.constant 0 : i32
    %c0_i32_0 = arith.constant 0 : i32
    return %arg0, %c0_i32 : i32, i32
  }
  func.func @transform_1(%arg0: i32) -> (i32, i32) {
    %c0_i32 = arith.constant 0 : i32
    %c0_i32_0 = arith.constant 0 : i32
    %c0_i32_1 = arith.constant 0 : i32
    return %c0_i32, %c0_i32_0 : i32, i32
  }
  func.func @transform_2(%arg0: i32) -> (i32, i32) {
    %c0_i32 = arith.constant 0 : i32
    %c0_i32_0 = arith.constant 0 : i32
    return %arg0, %c0_i32 : i32, i32
  }
  func.func @transform_3(%arg0: i32) -> (i32, i32) {
    %c0_i32 = arith.constant 0 : i32
    %c0_i32_0 = arith.constant 0 : i32
    return %arg0, %c0_i32 : i32, i32
  }
}

</mosaic_0001>

<llo_original>
// kernel: tpu_custom_call.1
$region0: #{tpu_custom_call.1}
  #allocation0 [shape = 'u32[]', space=smem, size = 0x4, offset = 0x4, fixed_abs, tag = 'smem constant byte address 0x4 - core index']
  #allocation1 [shape = 'u32[144,128]{1,0:T(1,128)}', space=vmem, size = 0x12000, scoped, tag = 'internal scratch']
  %s0 = inlined_call_operand.vmem [shape: f32[8,1], index: 0, kind: input, shape index: {}]
  %s1 = inlined_call_operand.vmem [shape: f32[1,16], index: 1, kind: input, shape index: {}]
  %s2 = inlined_call_operand.hbm [shape: f32[8,16], index: 2, kind: output, shape index: {0}]
  %s3 = inlined_call_operand.hbm [shape: f32[8,16], index: 3, kind: output, shape index: {1}]
  %4 = xla_tuple %s2, %s3
  %s5 = sld [smem:[#allocation0]]
  $region26: #{tpu_custom_call.1} parent=0
    _
  %s7 = ssub.s32 1, %s5
  %s8 = scalar_select 0, %s7, %s5
  $region1: #{tpu_custom_call.1} parent=0
    #allocation2 [shape = 'u8[4096]{0}', space=vmem, size = 0x1000, scoped, tag = 'output window, operand 0, single buffered']
    #allocation3 [shape = 's32[1]{0}', space=sflag, size = 0x4, scoped, tag = 'scoped memory for tpu_custom_call.1']
    #allocation4 [shape = 'u8[4096]{0}', space=vmem, size = 0x1000, scoped, tag = 'output window, operand 1, single buffered']
    #allocation5 [shape = 's32[1]{0}', space=sflag, size = 0x4, scoped, tag = 'scoped memory for tpu_custom_call.1']
    %9 = vsyncpa [#allocation3], 0
    %10 = vsyncpa [#allocation5], 0
    // Predicated region
    $region2: #{tpu_custom_call.1} parent=1 // pred_check
      _
    $region3: #{tpu_custom_call.1} parent=1 // pred_check_branch
      %12 = sbr.rel (0) target = $region5
    $region4: #{tpu_custom_call.1} parent=1 // pred_region
      _
    $region5: #{tpu_custom_call.1} parent=1 // pred_fallthru
      _
    // Predicated region
    $region6: #{tpu_custom_call.1} parent=1 // pred_check
      _
    $region7: #{tpu_custom_call.1} parent=1 // pred_check_branch
      %14 = sbr.rel (0) target = $region9
    $region8: #{tpu_custom_call.1} parent=1 // pred_region
      _
    $region9: #{tpu_custom_call.1} parent=1 // pred_fallthru
      _
    %v15 = vld [vmem:[%s0] sm:$0xff]
    %v16 = vld [vmem:[%s1] sm:$0x1]
    %18 = vset.pattern.permute.xlu0 0
    %19 = vperm.xlu0 %18, %v15
    %v20 = vpop.permute.xlu0 %19
    %v23 = vlaneseq
    %v24 = vshrl.u32 %v23, 7
    %v25 = vsub.s32 0, %v24
    %v26 = vrot.slane %v16, %v25
    %v28 = vmul.f32 %v20, %v26
    %v29 = vand.u32 2147483647, %v28
    %vm30 = vcmp.le.f32.partialorder %v29, 0.7853982
    %vm31 = vcmp.lt.s32.totalorder %v28, 0
    %v32 = vand.u32 %v28, 2139095040
    %v33 = vshrl.u32 %v32, 23
    %v34 = vsub.s32 %v33, 127
    %v35 = vand.u32 2147483647, %v28
    %v36 = vand.u32 %v35, 8388607
    %v37 = vor.u32 %v36, 8388608
    %v38 = vsub.s32 0, %v37
    %v39 = vadd.s32 %v34, 1
    %vm40 = vcmp.gt.s32.totalorder %v39, 0
    %v41 = vsel %vm40, %v39, 0
    %v42 = vshrl.u32 %v41, 5
    %v43 = vand.u32 %v41, 31
    %v44 = vsub.s32 32, %v43
    %v45 = vshrl.u32 683565275, %v44
    %v46 = vshll.u32 683565275, %v43
    %v47 = vshrl.u32 2475754826, %v44
    %v48 = vor.u32 %v46, %v47
    %v49 = vshll.u32 2475754826, %v43
    %v50 = vshrl.u32 2131351028, %v44
    %v51 = vor.u32 %v49, %v50
    %v52 = vshll.u32 2131351028, %v43
    %v53 = vshrl.u32 2102212464, %v44
    %v54 = vor.u32 %v52, %v53
    %v55 = vshll.u32 2102212464, %v43
    %v56 = vshrl.u32 920167782, %v44
    %v57 = vor.u32 %v55, %v56
    %v58 = vshll.u32 920167782, %v43
    %v59 = vshrl.u32 1326507024, %v44
    %v60 = vor.u32 %v58, %v59
    %vm61 = vcmp.lt.s32.totalorder %v42, 1
    %vm62 = vcmp.lt.s32.totalorder %v42, 2
    %vm63 = vcmp.lt.s32.totalorder %v42, 3
    %vm64 = vcmp.lt.s32.totalorder %v42, 4
    %v65 = vsel %vm61, %v45, %v48
    %v66 = vsel %vm64, %v54, 2102212464
    %v67 = vsel %vm63, %v51, %v66
    %v68 = vsel %vm62, %v65, %v67
    %v69 = vsel %vm61, %v48, %v51
    %v70 = vsel %vm64, %v57, 920167782
    %v71 = vsel %vm63, %v54, %v70
    %v72 = vsel %vm62, %v69, %v71
    %v73 = vsel %vm61, %v51, %v54
    %v74 = vsel %vm64, %v60, 1326507024
    %v75 = vsel %vm63, %v57, %v74
    %v76 = vsel %vm62, %v73, %v75
    %v77 = vshll.u32 %v37, 8
    %v78 = vmul.u32.u64.compose %v77, %v76
    %v79 = vextract.low.u32 %v78
    %v80 = vextract.high.u32 %v78
    %v81 = vmul.u32.u64.compose %v77, %v72
    %v82 = vextract.low.u32 %v81
    %v83 = vextract.high.u32 %v81
    %v84 = vmul.u32 %v77, %v68
    %v85 = vadd.s32 %v80, %v82
    %vm86 = vc.u32 %v80, %v82
    %v87 = vadd.s32 %v83, 1
    %v88 = vsel %vm86, %v87, %v83
    %v89 = vadd.s32 %v84, %v88
    %v90 = vadd.s32 %v89, 536870912
    %v91 = vshrl.u32 %v90, 30
    %v92 = vshll.u32 %v91, 30
    %v93 = vsub.s32 %v89, %v92
    %vm94 = vcmp.lt.s32.totalorder %v93, 0
    %v95 = vsub.s32 0, %v93
    %v96 = vsel %vm94, %v95, %v93
    %v97 = vclz %v96
    %v98 = vsub.s32 %v97, 2
    %vm99 = vcmp.gt.s32.totalorder 0, %v98
    %v100 = vsel %vm99, 0, %v98
    %v101 = vsub.s32 32, %v100
    %v102 = vshll.u32 %v93, %v100
    %v103 = vshrl.u32 %v85, %v101
    %v104 = vor.u32 %v102, %v103
    %v105 = vsub.s32 4294967266, %v100
    %v106 = vadd.s32 %v105, 127
    %v107 = vshll.u32 %v106, 23
    %v108 = vor.u32 4788187, %v107
    %v109 = vand.u32 2147483647, %v108
    %v111 = vcvt.s32.f32 %v104
    %v112 = vmul.f32 %v111, %v109
    %v113 = vxor.u32 %v112, 2147483648
    %v114 = vsel %vm31, %v113, %v112
    %v115 = vsub.s32 4, %v91
    %v116 = vsel %vm31, %v115, %v91
    %v117 = vsel %vm30, %v28, %v114
    %v118 = vsel %vm30, 0, %v116
    %v119 = vcosq.f32.pop %v117
    %v120 = vsinq.f32.pop %v117
    %vm121 = vweird.f32 %v28
    %v122 = vadd.s32 %v118, 3
    %v123 = vand.u32 %v122, 3
    %vm124 = vcmp.lt.s32.totalorder %v123, 2
    %vm125 = vcmp.eq.s32.totalorder %v123, 0
    %v126 = vxor.u32 %v120, 2147483648
    %v127 = vsel %vm125, %v119, %v126
    %vm128 = vcmp.eq.s32.totalorder %v123, 2
    %v129 = vxor.u32 %v119, 2147483648
    %v130 = vsel %vm128, %v129, %v120
    %v131 = vsel %vm124, %v127, %v130
    %v132 = vsel %vm121, nan, %v131
    %vm133 = vcmask 130048
    %134 = vst.msk [vmem:[#allocation2] sm:$0xff] %vm133, %v132
    %v135 = vand.u32 2147483647, %v28
    %vm136 = vcmp.le.f32.partialorder %v135, 0.7853982
    %vm137 = vcmp.lt.s32.totalorder %v28, 0
    %v138 = vand.u32 %v28, 2139095040
    %v139 = vshrl.u32 %v138, 23
    %v140 = vsub.s32 %v139, 127
    %v141 = vand.u32 2147483647, %v28
    %v142 = vand.u32 %v141, 8388607
    %v143 = vor.u32 %v142, 8388608
    %v144 = vsub.s32 0, %v143
    %v145 = vadd.s32 %v140, 1
    %vm146 = vcmp.gt.s32.totalorder %v145, 0
    %v147 = vsel %vm146, %v145, 0
    %v148 = vshrl.u32 %v147, 5
    %v149 = vand.u32 %v147, 31
    %v150 = vsub.s32 32, %v149
    %v151 = vshrl.u32 683565275, %v150
    %v152 = vshll.u32 683565275, %v149
    %v153 = vshrl.u32 2475754826, %v150
    %v154 = vor.u32 %v152, %v153
    %v155 = vshll.u32 2475754826, %v149
    %v156 = vshrl.u32 2131351028, %v150
    %v157 = vor.u32 %v155, %v156
    %v158 = vshll.u32 2131351028, %v149
    %v159 = vshrl.u32 2102212464, %v150
    %v160 = vor.u32 %v158, %v159
    %v161 = vshll.u32 2102212464, %v149
    %v162 = vshrl.u32 920167782, %v150
    %v163 = vor.u32 %v161, %v162
    %v164 = vshll.u32 920167782, %v149
    %v165 = vshrl.u32 1326507024, %v150
    %v166 = vor.u32 %v164, %v165
    %vm167 = vcmp.lt.s32.totalorder %v148, 1
    %vm168 = vcmp.lt.s32.totalorder %v148, 2
    %vm169 = vcmp.lt.s32.totalorder %v148, 3
    %vm170 = vcmp.lt.s32.totalorder %v148, 4
    %v171 = vsel %vm167, %v151, %v154
    %v172 = vsel %vm170, %v160, 2102212464
    %v173 = vsel %vm169, %v157, %v172
    %v174 = vsel %vm168, %v171, %v173
    %v175 = vsel %vm167, %v154, %v157
    %v176 = vsel %vm170, %v163, 920167782
    %v177 = vsel %vm169, %v160, %v176
    %v178 = vsel %vm168, %v175, %v177
    %v179 = vsel %vm167, %v157, %v160
    %v180 = vsel %vm170, %v166, 1326507024
    %v181 = vsel %vm169, %v163, %v180
    %v182 = vsel %vm168, %v179, %v181
    %v183 = vshll.u32 %v143, 8
    %v184 = vmul.u32.u64.compose %v183, %v182
    %v185 = vextract.low.u32 %v184
    %v186 = vextract.high.u32 %v184
    %v187 = vmul.u32.u64.compose %v183, %v178
    %v188 = vextract.low.u32 %v187
    %v189 = vextract.high.u32 %v187
    %v190 = vmul.u32 %v183, %v174
    %v191 = vadd.s32 %v186, %v188
    %vm192 = vc.u32 %v186, %v188
    %v193 = vadd.s32 %v189, 1
    %v194 = vsel %vm192, %v193, %v189
    %v195 = vadd.s32 %v190, %v194
    %v196 = vadd.s32 %v195, 536870912
    %v197 = vshrl.u32 %v196, 30
    %v198 = vshll.u32 %v197, 30
    %v199 = vsub.s32 %v195, %v198
    %vm200 = vcmp.lt.s32.totalorder %v199, 0
    %v201 = vsub.s32 0, %v199
    %v202 = vsel %vm200, %v201, %v199
    %v203 = vclz %v202
    %v204 = vsub.s32 %v203, 2
    %vm205 = vcmp.gt.s32.totalorder 0, %v204
    %v206 = vsel %vm205, 0, %v204
    %v207 = vsub.s32 32, %v206
    %v208 = vshll.u32 %v199, %v206
    %v209 = vshrl.u32 %v191, %v207
    %v210 = vor.u32 %v208, %v209
    %v211 = vsub.s32 4294967266, %v206
    %v212 = vadd.s32 %v211, 127
    %v213 = vshll.u32 %v212, 23
    %v214 = vor.u32 4788187, %v213
    %v215 = vand.u32 2147483647, %v214
    %v217 = vcvt.s32.f32 %v210
    %v218 = vmul.f32 %v217, %v215
    %v219 = vxor.u32 %v218, 2147483648
    %v220 = vsel %vm137, %v219, %v218
    %v221 = vsub.s32 4, %v197
    %v222 = vsel %vm137, %v221, %v197
    %v223 = vsel %vm136, %v28, %v220
    %v224 = vsel %vm136, 0, %v222
    %v225 = vcosq.f32.pop %v223
    %v226 = vsinq.f32.pop %v223
    %vm227 = vweird.f32 %v28
    %v228 = vand.u32 %v224, 3
    %vm229 = vcmp.lt.s32.totalorder %v228, 2
    %vm230 = vcmp.eq.s32.totalorder %v228, 0
    %v231 = vxor.u32 %v226, 2147483648
    %v232 = vsel %vm230, %v225, %v231
    %vm233 = vcmp.eq.s32.totalorder %v228, 2
    %v234 = vxor.u32 %v225, 2147483648
    %v235 = vsel %vm233, %v234, %v226
    %v236 = vsel %vm229, %v232, %v235
    %v237 = vsel %vm227, nan, %v236
    %238 = vst.msk [vmem:[#allocation4] sm:$0xff] %vm133, %v237
    // Predicated region
    $region10: #{tpu_custom_call.1} parent=1 // pred_check
      _
    $region11: #{tpu_custom_call.1} parent=1 // pred_check_branch
      %240 = sbr.rel (0) target = $region13
    $region12: #{tpu_custom_call.1} parent=1 // pred_region
      %s242 = ssub.s32 128, 128
      %243 = vsyncadd [#allocation3], %s242
      %s245 = sshll.u32 [#allocation2], 4
      %s246 = int_to_ptr.vmem [resolvable:$true] %s245
      %248 = dma.vmem_to_hbm [thread:$0]  %s246, 128, %s2, [#allocation3]
    $region13: #{tpu_custom_call.1} parent=1 // pred_fallthru
      _
    // Predicated region
    $region14: #{tpu_custom_call.1} parent=1 // pred_check
      _
    $region15: #{tpu_custom_call.1} parent=1 // pred_check_branch
      %250 = sbr.rel (0) target = $region17
    $region16: #{tpu_custom_call.1} parent=1 // pred_region
      %s252 = ssub.s32 128, 128
      %253 = vsyncadd [#allocation5], %s252
      %s255 = sshll.u32 [#allocation4], 4
      %s256 = int_to_ptr.vmem [resolvable:$true] %s255
      %258 = dma.vmem_to_hbm [thread:$0]  %s256, 128, %s3, [#allocation5]
    $region17: #{tpu_custom_call.1} parent=1 // pred_fallthru
      _
    // Predicated region
    $region18: #{tpu_custom_call.1} parent=1 // pred_check
      _
    $region19: #{tpu_custom_call.1} parent=1 // pred_check_branch
      %260 = sbr.rel (0) target = $region21
    $region20: #{tpu_custom_call.1} parent=1 // pred_region
      %261 = dma.done [#allocation3], 128
    $region21: #{tpu_custom_call.1} parent=1 // pred_fallthru
      _
    // Predicated region
    $region22: #{tpu_custom_call.1} parent=1 // pred_check
      _
    $region23: #{tpu_custom_call.1} parent=1 // pred_check_branch
      %263 = sbr.rel (0) target = $region25
    $region24: #{tpu_custom_call.1} parent=1 // pred_region
      %264 = dma.done [#allocation5], 128
    $region25: #{tpu_custom_call.1} parent=1 // pred_fallthru
      _
    %265 = vsyncpa [#allocation3], 1
    %266 = vsyncpa [#allocation5], 1

</llo_original>
